<compile_context>
chip_gen: v7x
topology: tpu7x:2x2x1
jax: 0.10.0
libtpu: 0.0.40
codegen_flags: <defaults>
</compile_context>

<pallas_src>
import jax
import jax.numpy as jnp
from jax.experimental import pallas as pl
from jax.experimental.pallas import tpu as pltpu

# ---------------- model hyper-parameters (synthetic, deterministic) ----------
N = 2            # batch
C_IN = 4         # input channels
H = W = 16       # spatial
C_OUT = 8        # conv output channels
KH = KW = 3      # conv kernel
NUM_CLASSES = 10
HW = H * W
K_DIM = KH * KW * C_IN           # 36  (im2col K for the reference)
WPAD = W + 2                     # padded row width (18)
K_PAD = 128                      # banded-matmul K, lane-padded

OUT_LANES = 128                  # packed output row width (lane-dense)
FEAT_OFF = 0                     # feats occupy lanes [0, C_OUT)
LOGIT_OFF = C_OUT                # logits occupy lanes [C_OUT, C_OUT+NUM_CLASSES)
assert C_OUT + NUM_CLASSES <= OUT_LANES
assert W * C_OUT == 128          # conv activation row is exactly one lane tile
assert WPAD * C_IN <= K_PAD      # padded input row fits one lane tile


# ------------------------------- Pallas kernel -------------------------------
def _searchspace_model_kernel(lhs_ref, bd_ref, bconv_ref, head_ref, hbias_ref,
                              out_ref):
    # lhs_ref  : [KH, N*H, K_PAD]   bf16  per-ky stacked padded rows (batch in M)
    # bd_ref   : [KH, K_PAD, 128]   bf16  banded conv weight slab per ky
    # bconv_ref: [1, 128]           f32   conv bias tiled over w
    # head_ref : [128, OUT_LANES]   f32   (avg-pool matrix) @ (feat-id | fc weight)
    # hbias_ref: [1, OUT_LANES]     f32   packed head bias (fc bias in logit lanes)
    # out_ref  : [N, OUT_LANES]     f32   packed (feats | logits) rows

    # Conv as 3 lane-aligned banded matmuls, f32 accumulation on the MXU.
    acc = jnp.zeros((N * H, W * C_OUT), dtype=jnp.float32)
    for ky in range(KH):                                   # static unroll: 3 taps
        acc = acc + jnp.dot(lhs_ref[ky], bd_ref[ky],
                            preferred_element_type=jnp.float32)

    # Bias + ReLU on the VPU (f32).
    act = jnp.maximum(acc + bconv_ref[...], 0.0)           # [N*H, 128]

    # Per-image column sums (sublane-aligned slices: offsets 0, 16), then one
    # lane-dense [N,128] x [128,128] matmul that yields packed (feats | logits).
    colsum = jnp.concatenate(
        [jnp.sum(act[n * H:(n + 1) * H], axis=0, keepdims=True)
         for n in range(N)], axis=0)                       # [N, 128]
    out_ref[...] = jnp.dot(colsum, head_ref[...],
                           preferred_element_type=jnp.float32) + hbias_ref[...]


# --------------------- one-time parameter preprocessing ----------------------
def prepare_params(wconv, bconv, wfc, bfc):
    """Reshape raw weights into the lane-dense slabs the kernel consumes.

    Done once, off the per-step forward path (mirrors holding preprocessed
    parameters on the module)."""
    f32 = jnp.float32
    wk = wconv.astype(f32).reshape(KH, KW, C_IN, C_OUT)     # [3, 3, C_IN, C_OUT]

    # Banded slab per ky: band[ky, p, c, w, d] = sum_kx [p == w + kx] * wk[ky,kx,c,d]
    band = jnp.zeros((KH, WPAD, C_IN, W, C_OUT), dtype=f32)
    for kx in range(KW):
        shift = (jnp.arange(WPAD)[:, None]
                 == (jnp.arange(W)[None, :] + kx)).astype(f32)       # [WPAD, W]
        band = band + jnp.einsum("pw,kcd->kpcwd", shift, wk[:, kx])
    bd3 = band.reshape(KH, WPAD * C_IN, W * C_OUT)          # [3, 72, 128]
    bd3 = jnp.pad(bd3, ((0, 0), (0, K_PAD - WPAD * C_IN), (0, 0)))   # [3,128,128]
    bd3 = bd3.astype(jnp.bfloat16)                          # bf16 MXU operand

    # Conv bias tiled to match the [(w, c_out)] activation lane layout.
    bconv_row = jnp.tile(bconv.astype(f32).reshape(1, C_OUT), (1, W))  # [1, 128]

    # Avg-pool matrix: P[(w,d), d'] = (d == d') / (H*W).
    pool = jnp.tile(jnp.eye(C_OUT, dtype=f32), (W, 1)) / float(H * W)  # [128, 8]

    # Packed head: identity (-> feats lanes) | fc weight (-> logit lanes).
    head = jnp.zeros((C_OUT, OUT_LANES), dtype=f32)
    head = head.at[:, FEAT_OFF:FEAT_OFF + C_OUT].set(jnp.eye(C_OUT, dtype=f32))
    head = head.at[:, LOGIT_OFF:LOGIT_OFF + NUM_CLASSES].set(wfc.astype(f32))
    head_mat = pool @ head                                  # [128, 128], stays f32

    head_bias = jnp.zeros((1, OUT_LANES), dtype=f32)
    head_bias = head_bias.at[:, LOGIT_OFF:LOGIT_OFF + NUM_CLASSES].set(
        bfc.astype(f32).reshape(1, NUM_CLASSES))
    return bd3, bconv_row, head_mat, head_bias


# ------------------------------- forward wrapper ------------------------------
@jax.jit
def searchspace_forward(x_nchw, bd3, bconv_row, head_mat, head_bias):
    """Equivalent of SearchSpace.forward(x) -> (features, logits)."""
    # NCHW -> padded NHWC, flattened rows: [N, H+2, WPAD*C_IN]  (tiny glue).
    x_nhwc = jnp.transpose(x_nchw, (0, 2, 3, 1)).astype(jnp.float32)
    xp = jnp.pad(x_nhwc, ((0, 0), (1, 1), (1, 1), (0, 0)))
    xp = xp.reshape(N, H + 2, WPAD * C_IN)                  # [N, 18, 72]

    # Per-ky shifted rows with the batch folded into M (= N*H), lane-padded to
    # 128 and cast to bf16 for the MXU.  [KH, N*H, K_PAD] = [3, 32, 128].
    lhs = jnp.stack([xp[:, ky:ky + H, :].reshape(N * H, WPAD * C_IN)
                     for ky in range(KH)], axis=0)
    lhs = jnp.pad(lhs, ((0, 0), (0, 0), (0, K_PAD - WPAD * C_IN)))
    lhs = lhs.astype(jnp.bfloat16)

    cost = pl.CostEstimate(
        flops=2 * (KH * (N * H) * K_PAD * (W * C_OUT) + N * 128 * OUT_LANES),
        transcendentals=0,
        bytes_accessed=(2 * (lhs.size + bd3.size)
                        + 4 * (bconv_row.size + head_mat.size + head_bias.size
                               + N * OUT_LANES)),
    )

    packed = pl.pallas_call(
        _searchspace_model_kernel,
        grid=(1,),                                          # single fused step
        in_specs=[
            pl.BlockSpec((KH, N * H, K_PAD), lambda i: (0, 0, 0)),
            pl.BlockSpec((KH, K_PAD, W * C_OUT), lambda i: (0, 0, 0)),
            pl.BlockSpec((1, W * C_OUT), lambda i: (0, 0)),
            pl.BlockSpec((W * C_OUT, OUT_LANES), lambda i: (0, 0)),
            pl.BlockSpec((1, OUT_LANES), lambda i: (0, 0)),
        ],
        out_specs=pl.BlockSpec((N, OUT_LANES), lambda i: (0, 0)),
        out_shape=jax.ShapeDtypeStruct((N, OUT_LANES), jnp.float32),
        compiler_params=pltpu.CompilerParams(
            dimension_semantics=("arbitrary",),
        ),
        cost_estimate=cost,
    )(lhs, bd3, bconv_row, head_mat, head_bias)

    feats = packed[:, FEAT_OFF:FEAT_OFF + C_OUT]
    logits = packed[:, LOGIT_OFF:LOGIT_OFF + NUM_CLASSES]
    return feats, logits


# ------------------------------ reference (pure JAX) --------------------------
def _im2col_nhwc(x_nhwc):
    """Extract 3x3 (pad=1) patches.  Column order = (ky, kx, c_in)."""
    n, h, w, c = x_nhwc.shape
    xp = jnp.pad(x_nhwc, ((0, 0), (1, 1), (1, 1), (0, 0)))
    cols = []
    for ky in range(KH):
        for kx in range(KW):
            cols.append(xp[:, ky:ky + h, kx:kx + w, :])
    patches = jnp.concatenate(cols, axis=-1)
    return patches.reshape(n * h * w, KH * KW * c)


def reference_forward(x_nchw, wconv, bconv, wfc, bfc):
    x_nhwc = jnp.transpose(x_nchw, (0, 2, 3, 1)).astype(jnp.float32)
    patches = _im2col_nhwc(x_nhwc)
    act = jnp.maximum(patches @ wconv + bconv, 0.0)
    feats = act.reshape(N, HW, C_OUT).mean(axis=1)
    logits = feats @ wfc + bfc
    return feats, logits


# ---------------------------------- main ---------------------------------------
if __name__ == "__main__":
    key = jax.random.PRNGKey(0)
    k_x, k_wc, k_bc, k_wf, k_bf = jax.random.split(key, 5)

    x = jax.random.normal(k_x, (N, C_IN, H, W), dtype=jnp.float32)
    wconv = 0.1 * jax.random.normal(k_wc, (K_DIM, C_OUT), dtype=jnp.float32)
    bconv = 0.01 * jax.random.normal(k_bc, (1, C_OUT), dtype=jnp.float32)
    wfc = 0.1 * jax.random.normal(k_wf, (C_OUT, NUM_CLASSES), dtype=jnp.float32)
    bfc = 0.01 * jax.random.normal(k_bf, (1, NUM_CLASSES), dtype=jnp.float32)

    params = prepare_params(wconv, bconv, wfc, bfc)   # one-time weight prep
    feats, logits = searchspace_forward(x, *params)
    jax.block_until_ready((feats, logits))

    ref_feats, ref_logits = reference_forward(x, wconv, bconv, wfc, bfc)
    assert feats.shape == (N, C_OUT) and logits.shape == (N, NUM_CLASSES)
    # bf16 MXU operands -> tolerance relaxed vs. the f32 reference.
    assert jnp.allclose(feats, ref_feats, atol=1e-2, rtol=1e-2)
    assert jnp.allclose(logits, ref_logits, atol=1e-2, rtol=1e-2)

    # TODO(synk): arch_parameters / beta_parameters / set_arch_parameters /
    # new_epoch / new_step / get_num_skip_ops are abstract parameter
    # bookkeeping with no tensor compute; only forward() is kernelized.
    print("KERNEL_OK")
</pallas_src>

<mosaic_0001>
module attributes {stable_mosaic.version = 11 : i64} {
  func.func @_searchspace_model_kernel(%arg0: i32, %arg1: memref<3x32x128xbf16, #tpu.memory_space<vmem>>, %arg2: memref<3x128x128xbf16, #tpu.memory_space<vmem>>, %arg3: memref<1x128xf32, #tpu.memory_space<vmem>>, %arg4: memref<128x128xf32, #tpu.memory_space<vmem>>, %arg5: memref<1x128xf32, #tpu.memory_space<vmem>>, %arg6: memref<2x128xf32, #tpu.memory_space<vmem>>) attributes {dimension_semantics = [#tpu.dimension_semantics<arbitrary>], iteration_bounds = array<i64: 1>, scalar_prefetch = 0 : i64, scratch_operands = 0 : i64, tpu.core_type = #tpu.core_type<tc>, window_params = [{pipeline_mode = #tpu.pipeline_mode<synchronous>, transform_indices = @transform_0, window_bounds = array<i64: 3, 32, 128>}, {pipeline_mode = #tpu.pipeline_mode<synchronous>, transform_indices = @transform_1, window_bounds = array<i64: 3, 128, 128>}, {pipeline_mode = #tpu.pipeline_mode<synchronous>, transform_indices = @transform_2, window_bounds = array<i64: 1, 128>}, {pipeline_mode = #tpu.pipeline_mode<synchronous>, transform_indices = @transform_3, window_bounds = array<i64: 128, 128>}, {pipeline_mode = #tpu.pipeline_mode<synchronous>, transform_indices = @transform_4, window_bounds = array<i64: 1, 128>}, {pipeline_mode = #tpu.pipeline_mode<synchronous>, transform_indices = @transform_5, window_bounds = array<i64: 2, 128>}]} {
    %cst = arith.constant 0.000000e+00 : f32
    %0 = vector.broadcast %cst : f32 to vector<32x128xf32>
    %c0 = arith.constant 0 : index
    %c0_0 = arith.constant 0 : index
    %c0_1 = arith.constant 0 : index
    %1 = vector.load %arg1[%c0, %c0_0, %c0_1] : memref<3x32x128xbf16, #tpu.memory_space<vmem>>, vector<1x32x128xbf16>
    %2 = vector.shape_cast %1 : vector<1x32x128xbf16> to vector<32x128xbf16>
    %c0_2 = arith.constant 0 : index
    %c0_3 = arith.constant 0 : index
    %c0_4 = arith.constant 0 : index
    %3 = vector.load %arg2[%c0_2, %c0_3, %c0_4] : memref<3x128x128xbf16, #tpu.memory_space<vmem>>, vector<1x128x128xbf16>
    %4 = vector.shape_cast %3 : vector<1x128x128xbf16> to vector<128x128xbf16>
    %cst_5 = arith.constant dense<0.000000e+00> : vector<32x128xf32>
    %5 = tpu.matmul %2, %4, %cst_5 {dimension_numbers = #tpu.dot_dimension_numbers<[1], [0], [0], [1], [0, 0, 1, 1], [], []>} : vector<32x128xbf16>, vector<128x128xbf16>, vector<32x128xf32> -> vector<32x128xf32>
    %6 = arith.addf %0, %5 : vector<32x128xf32>
    %c1 = arith.constant 1 : index
    %c0_6 = arith.constant 0 : index
    %c0_7 = arith.constant 0 : index
    %7 = vector.load %arg1[%c1, %c0_6, %c0_7] : memref<3x32x128xbf16, #tpu.memory_space<vmem>>, vector<1x32x128xbf16>
    %8 = vector.shape_cast %7 : vector<1x32x128xbf16> to vector<32x128xbf16>
    %c1_8 = arith.constant 1 : index
    %c0_9 = arith.constant 0 : index
    %c0_10 = arith.constant 0 : index
    %9 = vector.load %arg2[%c1_8, %c0_9, %c0_10] : memref<3x128x128xbf16, #tpu.memory_space<vmem>>, vector<1x128x128xbf16>
    %10 = vector.shape_cast %9 : vector<1x128x128xbf16> to vector<128x128xbf16>
    %cst_11 = arith.constant dense<0.000000e+00> : vector<32x128xf32>
    %11 = tpu.matmul %8, %10, %cst_11 {dimension_numbers = #tpu.dot_dimension_numbers<[1], [0], [0], [1], [0, 0, 1, 1], [], []>} : vector<32x128xbf16>, vector<128x128xbf16>, vector<32x128xf32> -> vector<32x128xf32>
    %12 = arith.addf %6, %11 : vector<32x128xf32>
    %c2 = arith.constant 2 : index
    %c0_12 = arith.constant 0 : index
    %c0_13 = arith.constant 0 : index
    %13 = vector.load %arg1[%c2, %c0_12, %c0_13] : memref<3x32x128xbf16, #tpu.memory_space<vmem>>, vector<1x32x128xbf16>
    %14 = vector.shape_cast %13 : vector<1x32x128xbf16> to vector<32x128xbf16>
    %c2_14 = arith.constant 2 : index
    %c0_15 = arith.constant 0 : index
    %c0_16 = arith.constant 0 : index
    %15 = vector.load %arg2[%c2_14, %c0_15, %c0_16] : memref<3x128x128xbf16, #tpu.memory_space<vmem>>, vector<1x128x128xbf16>
    %16 = vector.shape_cast %15 : vector<1x128x128xbf16> to vector<128x128xbf16>
    %cst_17 = arith.constant dense<0.000000e+00> : vector<32x128xf32>
    %17 = tpu.matmul %14, %16, %cst_17 {dimension_numbers = #tpu.dot_dimension_numbers<[1], [0], [0], [1], [0, 0, 1, 1], [], []>} : vector<32x128xbf16>, vector<128x128xbf16>, vector<32x128xf32> -> vector<32x128xf32>
    %18 = arith.addf %12, %17 : vector<32x128xf32>
    %c0_18 = arith.constant 0 : index
    %c0_19 = arith.constant 0 : index
    %19 = vector.load %arg3[%c0_18, %c0_19] : memref<1x128xf32, #tpu.memory_space<vmem>>, vector<1x128xf32>
    %20 = vector.broadcast %19 : vector<1x128xf32> to vector<32x128xf32>
    %21 = arith.addf %18, %20 : vector<32x128xf32>
    %cst_20 = arith.constant 0.000000e+00 : f32
    %22 = vector.broadcast %cst_20 : f32 to vector<32x128xf32>
    %23 = arith.maximumf %21, %22 : vector<32x128xf32>
    %24 = vector.extract_strided_slice %23 {offsets = [0, 0], sizes = [16, 128], strides = [1, 1]} : vector<32x128xf32> to vector<16x128xf32>
    %cst_21 = arith.constant dense<0.000000e+00> : vector<128xf32>
    %25 = vector.multi_reduction <add>, %24, %cst_21 [0] : vector<16x128xf32> to vector<128xf32>
    %26 = vector.shape_cast %25 : vector<128xf32> to vector<1x128xf32>
    %27 = vector.extract_strided_slice %23 {offsets = [16, 0], sizes = [16, 128], strides = [1, 1]} : vector<32x128xf32> to vector<16x128xf32>
    %cst_22 = arith.constant dense<0.000000e+00> : vector<128xf32>
    %28 = vector.multi_reduction <add>, %27, %cst_22 [0] : vector<16x128xf32> to vector<128xf32>
    %29 = vector.shape_cast %28 : vector<128xf32> to vector<1x128xf32>
    %30 = tpu.concatenate %26, %29 in 0 : vector<1x128xf32>, vector<1x128xf32> -> vector<2x128xf32>
    %c0_23 = arith.constant 0 : index
    %c0_24 = arith.constant 0 : index
    %31 = vector.load %arg4[%c0_23, %c0_24] : memref<128x128xf32, #tpu.memory_space<vmem>>, vector<128x128xf32>
    %cst_25 = arith.constant dense<0.000000e+00> : vector<2x128xf32>
    %32 = tpu.matmul %30, %31, %cst_25 {dimension_numbers = #tpu.dot_dimension_numbers<[1], [0], [0], [1], [0, 0, 1, 1], [], []>} : vector<2x128xf32>, vector<128x128xf32>, vector<2x128xf32> -> vector<2x128xf32>
    %c0_26 = arith.constant 0 : index
    %c0_27 = arith.constant 0 : index
    %33 = vector.load %arg5[%c0_26, %c0_27] : memref<1x128xf32, #tpu.memory_space<vmem>>, vector<1x128xf32>
    %34 = vector.broadcast %33 : vector<1x128xf32> to vector<2x128xf32>
    %35 = arith.addf %32, %34 : vector<2x128xf32>
    %c0_28 = arith.constant 0 : index
    %c0_29 = arith.constant 0 : index
    %36 = vector.load %arg6[%c0_28, %c0_29] : memref<2x128xf32, #tpu.memory_space<vmem>>, vector<2x128xf32>
    tpu.vector_store %arg6[%c0_28, %c0_29], %35 {strides = array<i32>} : memref<2x128xf32, #tpu.memory_space<vmem>>, vector<2x128xf32>,
    return
  }
  func.func @transform_0(%arg0: i32) -> (i32, i32, i32) {
    %c0_i32 = arith.constant 0 : i32
    %c0_i32_0 = arith.constant 0 : i32
    %c0_i32_1 = arith.constant 0 : i32
    %c0_i32_2 = arith.constant 0 : i32
    return %c0_i32, %c0_i32_0, %c0_i32_1 : i32, i32, i32
  }
  func.func @transform_1(%arg0: i32) -> (i32, i32, i32) {
    %c0_i32 = arith.constant 0 : i32
    %c0_i32_0 = arith.constant 0 : i32
    %c0_i32_1 = arith.constant 0 : i32
    %c0_i32_2 = arith.constant 0 : i32
    return %c0_i32, %c0_i32_0, %c0_i32_1 : i32, i32, i32
  }
  func.func @transform_2(%arg0: i32) -> (i32, i32) {
    %c0_i32 = arith.constant 0 : i32
    %c0_i32_0 = arith.constant 0 : i32
    %c0_i32_1 = arith.constant 0 : i32
    return %c0_i32, %c0_i32_0 : i32, i32
  }
  func.func @transform_3(%arg0: i32) -> (i32, i32) {
    %c0_i32 = arith.constant 0 : i32
    %c0_i32_0 = arith.constant 0 : i32
    %c0_i32_1 = arith.constant 0 : i32
    return %c0_i32, %c0_i32_0 : i32, i32
  }
  func.func @transform_4(%arg0: i32) -> (i32, i32) {
    %c0_i32 = arith.constant 0 : i32
    %c0_i32_0 = arith.constant 0 : i32
    %c0_i32_1 = arith.constant 0 : i32
    return %c0_i32, %c0_i32_0 : i32, i32
  }
  func.func @transform_5(%arg0: i32) -> (i32, i32) {
    %c0_i32 = arith.constant 0 : i32
    %c0_i32_0 = arith.constant 0 : i32
    %c0_i32_1 = arith.constant 0 : i32
    return %c0_i32, %c0_i32_0 : i32, i32
  }
}

</mosaic_0001>

<llo_original>
// kernel: searchspace_forward.1
$region0: #{searchspace_forward.1}
  #allocation0 [shape = 'u32[]', space=smem, size = 0x4, offset = 0x4, fixed_abs, tag = 'smem constant byte address 0x4 - core index']
  #allocation1 [shape = 'u32[144,128]{1,0:T(1,128)}', space=vmem, size = 0x12000, scoped, tag = 'internal scratch']
  %s0 = inlined_call_operand.vmem [shape: bf16[3,32,128], index: 0, kind: input, shape index: {}]
  %s1 = inlined_call_operand.vmem [shape: bf16[3,128,128], index: 1, kind: input, shape index: {}]
  %s2 = inlined_call_operand.vmem [shape: f32[1,128], index: 2, kind: input, shape index: {}]
  %s3 = inlined_call_operand.vmem [shape: f32[128,128], index: 3, kind: input, shape index: {}]
  %s4 = inlined_call_operand.vmem [shape: f32[1,128], index: 4, kind: input, shape index: {}]
  %s5 = inlined_call_operand.vmem [shape: f32[2,128], index: 5, kind: output, shape index: {}]
  %s6 = sld [smem:[#allocation0]]
  $region30: #{searchspace_forward.1} parent=0
    _
  %s8 = ssub.s32 1, %s6
  %s9 = scalar_select 0, %s8, %s6
  // Predicated region
  $region2: #{searchspace_forward.1} parent=0 // pred_check
    _
  $region3: #{searchspace_forward.1} parent=0 // pred_check_branch
    %11 = sbr.rel (0) target = $region5
  $region4: #{searchspace_forward.1} parent=0 // pred_region
    _
  $region5: #{searchspace_forward.1} parent=0 // pred_fallthru
    _
  // Predicated region
  $region6: #{searchspace_forward.1} parent=0 // pred_check
    _
  $region7: #{searchspace_forward.1} parent=0 // pred_check_branch
    %13 = sbr.rel (0) target = $region9
  $region8: #{searchspace_forward.1} parent=0 // pred_region
    _
  $region9: #{searchspace_forward.1} parent=0 // pred_fallthru
    _
  // Predicated region
  $region10: #{searchspace_forward.1} parent=0 // pred_check
    _
  $region11: #{searchspace_forward.1} parent=0 // pred_check_branch
    %15 = sbr.rel (0) target = $region13
  $region12: #{searchspace_forward.1} parent=0 // pred_region
    _
  $region13: #{searchspace_forward.1} parent=0 // pred_fallthru
    _
  // Predicated region
  $region14: #{searchspace_forward.1} parent=0 // pred_check
    _
  $region15: #{searchspace_forward.1} parent=0 // pred_check_branch
    %17 = sbr.rel (0) target = $region17
  $region16: #{searchspace_forward.1} parent=0 // pred_region
    _
  $region17: #{searchspace_forward.1} parent=0 // pred_fallthru
    _
  // Predicated region
  $region18: #{searchspace_forward.1} parent=0 // pred_check
    _
  $region19: #{searchspace_forward.1} parent=0 // pred_check_branch
    %19 = sbr.rel (0) target = $region21
  $region20: #{searchspace_forward.1} parent=0 // pred_region
    _
  $region21: #{searchspace_forward.1} parent=0 // pred_fallthru
    _
  %v21 = vld [vmem:[%s0] sm:$0xf]
  %v22 = vld [vmem:[%s0 + $0x4] sm:$0xf]
  %v23 = vld [vmem:[%s0 + $0x8] sm:$0xf]
  %v24 = vld [vmem:[%s0 + $0xc] sm:$0xf]
  %v25 = vld [vmem:[%s1] sm:$0xf]
  %v26 = vld [vmem:[%s1 + $0x4] sm:$0xf]
  %v27 = vld [vmem:[%s1 + $0x8] sm:$0xf]
  %v28 = vld [vmem:[%s1 + $0xc] sm:$0xf]
  %v29 = vld [vmem:[%s1 + $0x10] sm:$0xf]
  %v30 = vld [vmem:[%s1 + $0x14] sm:$0xf]
  %v31 = vld [vmem:[%s1 + $0x18] sm:$0xf]
  %v32 = vld [vmem:[%s1 + $0x1c] sm:$0xf]
  %v33 = vld [vmem:[%s1 + $0x20] sm:$0xf]
  %v34 = vld [vmem:[%s1 + $0x24] sm:$0xf]
  %v35 = vld [vmem:[%s1 + $0x28] sm:$0xf]
  %v36 = vld [vmem:[%s1 + $0x2c] sm:$0xf]
  %v37 = vld [vmem:[%s1 + $0x30] sm:$0xf]
  %v38 = vld [vmem:[%s1 + $0x34] sm:$0xf]
  %v39 = vld [vmem:[%s1 + $0x38] sm:$0xf]
  %v40 = vld [vmem:[%s1 + $0x3c] sm:$0xf]
  %s41 = scalar_lea.vmem %s0, 16
  %v42 = vld [vmem:[%s41] sm:$0xf]
  %v43 = vld [vmem:[%s41 + $0x4] sm:$0xf]
  %v44 = vld [vmem:[%s41 + $0x8] sm:$0xf]
  %v45 = vld [vmem:[%s41 + $0xc] sm:$0xf]
  %s46 = scalar_lea.vmem %s1, 64
  %v47 = vld [vmem:[%s46] sm:$0xf]
  %v48 = vld [vmem:[%s46 + $0x4] sm:$0xf]
  %v49 = vld [vmem:[%s46 + $0x8] sm:$0xf]
  %v50 = vld [vmem:[%s46 + $0xc] sm:$0xf]
  %v51 = vld [vmem:[%s46 + $0x10] sm:$0xf]
  %v52 = vld [vmem:[%s46 + $0x14] sm:$0xf]
  %v53 = vld [vmem:[%s46 + $0x18] sm:$0xf]
  %v54 = vld [vmem:[%s46 + $0x1c] sm:$0xf]
  %v55 = vld [vmem:[%s46 + $0x20] sm:$0xf]
  %v56 = vld [vmem:[%s46 + $0x24] sm:$0xf]
  %v57 = vld [vmem:[%s46 + $0x28] sm:$0xf]
  %v58 = vld [vmem:[%s46 + $0x2c] sm:$0xf]
  %v59 = vld [vmem:[%s46 + $0x30] sm:$0xf]
  %v60 = vld [vmem:[%s46 + $0x34] sm:$0xf]
  %v61 = vld [vmem:[%s46 + $0x38] sm:$0xf]
  %v62 = vld [vmem:[%s46 + $0x3c] sm:$0xf]
  %v67 = vunpack.c.l.b16 %v42
  %v68 = vunpack.c.l.b16 %v43
  %v69 = vunpack.c.l.b16 %v44
  %v70 = vunpack.c.l.b16 %v45
  %v71 = vpack.c.b16 %v68, %v67
  %v72 = vpack.c.b16 %v70, %v69
  %v91 = vunpack.c.l.b16 %v47
  %v92 = vunpack.c.l.b16 %v48
  %v93 = vunpack.c.l.b16 %v49
  %v94 = vunpack.c.l.b16 %v50
  %v95 = vunpack.c.l.b16 %v51
  %v96 = vunpack.c.l.b16 %v52
  %v97 = vunpack.c.l.b16 %v53
  %v98 = vunpack.c.l.b16 %v54
  %v99 = vunpack.c.l.b16 %v55
  %v100 = vunpack.c.l.b16 %v56
  %v101 = vunpack.c.l.b16 %v57
  %v102 = vunpack.c.l.b16 %v58
  %v103 = vunpack.c.l.b16 %v59
  %v104 = vunpack.c.l.b16 %v60
  %v105 = vunpack.c.l.b16 %v61
  %v106 = vunpack.c.l.b16 %v62
  %v107 = vpack.c.b16 %v92, %v91
  %v108 = vpack.c.b16 %v94, %v93
  %v109 = vpack.c.b16 %v96, %v95
  %v110 = vpack.c.b16 %v98, %v97
  %v111 = vpack.c.b16 %v100, %v99
  %v112 = vpack.c.b16 %v102, %v101
  %v113 = vpack.c.b16 %v104, %v103
  %v114 = vpack.c.b16 %v106, %v105
  %123 = vmatprep.subr.bf16.mxu0 0
  %124 = vmatpush1.bf16.msra.mxu0 %v107
  %125 = vmatprep.subr.bf16.mxu0 0
  %126 = vmatpush1.bf16.msra.mxu0 %v108
  %127 = vmatprep.subr.bf16.mxu0 0
  %128 = vmatpush1.bf16.msra.mxu0 %v109
  %129 = vmatprep.subr.bf16.mxu0 0
  %130 = vmatpush1.bf16.msra.mxu0 %v110
  %131 = vmatprep.subr.bf16.mxu0 0
  %132 = vmatpush1.bf16.msra.mxu0 %v111
  %133 = vmatprep.subr.bf16.mxu0 0
  %134 = vmatpush1.bf16.msra.mxu0 %v112
  %135 = vmatprep.subr.bf16.mxu0 0
  %136 = vmatpush1.bf16.msra.mxu0 %v113
  %137 = vmatprep.subr.bf16.mxu0 0
  %138 = vmatpush1.bf16.msra.mxu0 %v114
  %139 = vmatprep.subr.bf16.mxu0 0
  %140 = vmatpush1.bf16.msra.mxu0 0
  %141 = vmatprep.subr.bf16.mxu0 0
  %142 = vmatpush1.bf16.msra.mxu0 0
  %143 = vmatprep.subr.bf16.mxu0 0
  %144 = vmatpush1.bf16.msra.mxu0 0
  %145 = vmatprep.subr.bf16.mxu0 0
  %146 = vmatpush1.bf16.msra.mxu0 0
  %147 = vmatprep.subr.bf16.mxu0 0
  %148 = vmatpush1.bf16.msra.mxu0 0
  %149 = vmatprep.subr.bf16.mxu0 0
  %150 = vmatpush1.bf16.msra.mxu0 0
  %151 = vmatprep.subr.bf16.mxu0 0
  %152 = vmatpush1.bf16.msra.mxu0 0
  %153 = vmatprep.subr.bf16.mxu0 0
  %154 = vmatpush1.bf16.msra.mxu0 0
  %155 = vmatprep.mubr.bf16.mxu0 0
  %156 = vmatmul.mubr.bf16.gmra.mrb[0].mxu0 %v71
  %v157 = vpop.f32.mrb[0].mxu0
  %v158 = vadd.f32 0.0, %v157
  %v159 = vpop.f32.mrb[0].mxu0
  %v160 = vpop.f32.mrb[0].mxu0
  %v161 = vadd.f32 0.0, %v160
  %v162 = vpop.f32.mrb[0].mxu0
  %163 = vmatprep.mubr.bf16.mxu0 0
  %164 = vmatmul.mubr.bf16.gmra.mrb[0].mxu0 %v72
  %v165 = vpop.f32.mrb[0].mxu0
  %v166 = vadd.f32 0.0, %v165
  %v167 = vpop.f32.mrb[0].mxu0
  %v168 = vpop.f32.mrb[0].mxu0
  %v169 = vadd.f32 0.0, %v168
  %v170 = vpop.f32.mrb[0].mxu0
  %171 = vdwg.mxu0
  %v176 = vunpack.c.l.b16 %v21
  %v177 = vunpack.c.l.b16 %v22
  %v178 = vunpack.c.l.b16 %v23
  %v179 = vunpack.c.l.b16 %v24
  %v180 = vpack.c.b16 %v177, %v176
  %v181 = vpack.c.b16 %v179, %v178
  %v200 = vunpack.c.l.b16 %v25
  %v201 = vunpack.c.l.b16 %v26
  %v202 = vunpack.c.l.b16 %v27
  %v203 = vunpack.c.l.b16 %v28
  %v204 = vunpack.c.l.b16 %v29
  %v205 = vunpack.c.l.b16 %v30
  %v206 = vunpack.c.l.b16 %v31
  %v207 = vunpack.c.l.b16 %v32
  %v208 = vunpack.c.l.b16 %v33
  %v209 = vunpack.c.l.b16 %v34
  %v210 = vunpack.c.l.b16 %v35
  %v211 = vunpack.c.l.b16 %v36
  %v212 = vunpack.c.l.b16 %v37
  %v213 = vunpack.c.l.b16 %v38
  %v214 = vunpack.c.l.b16 %v39
  %v215 = vunpack.c.l.b16 %v40
  %v216 = vpack.c.b16 %v201, %v200
  %v217 = vpack.c.b16 %v203, %v202
  %v218 = vpack.c.b16 %v205, %v204
  %v219 = vpack.c.b16 %v207, %v206
  %v220 = vpack.c.b16 %v209, %v208
  %v221 = vpack.c.b16 %v211, %v210
  %v222 = vpack.c.b16 %v213, %v212
  %v223 = vpack.c.b16 %v215, %v214
  %232 = vmatprep.subr.bf16.mxu0 0
  %233 = vmatpush1.bf16.msra.mxu0 %v216
  %234 = vmatprep.subr.bf16.mxu0 0
  %235 = vmatpush1.bf16.msra.mxu0 %v217
  %236 = vmatprep.subr.bf16.mxu0 0
  %237 = vmatpush1.bf16.msra.mxu0 %v218
  %238 = vmatprep.subr.bf16.mxu0 0
  %239 = vmatpush1.bf16.msra.mxu0 %v219
  %240 = vmatprep.subr.bf16.mxu0 0
  %241 = vmatpush1.bf16.msra.mxu0 %v220
  %242 = vmatprep.subr.bf16.mxu0 0
  %243 = vmatpush1.bf16.msra.mxu0 %v221
  %244 = vmatprep.subr.bf16.mxu0 0
  %245 = vmatpush1.bf16.msra.mxu0 %v222
  %246 = vmatprep.subr.bf16.mxu0 0
  %247 = vmatpush1.bf16.msra.mxu0 %v223
  %248 = vmatprep.subr.bf16.mxu0 0
  %249 = vmatpush1.bf16.msra.mxu0 0
  %250 = vmatprep.subr.bf16.mxu0 0
  %251 = vmatpush1.bf16.msra.mxu0 0
  %252 = vmatprep.subr.bf16.mxu0 0
  %253 = vmatpush1.bf16.msra.mxu0 0
  %254 = vmatprep.subr.bf16.mxu0 0
  %255 = vmatpush1.bf16.msra.mxu0 0
  %256 = vmatprep.subr.bf16.mxu0 0
  %257 = vmatpush1.bf16.msra.mxu0 0
  %258 = vmatprep.subr.bf16.mxu0 0
  %259 = vmatpush1.bf16.msra.mxu0 0
  %260 = vmatprep.subr.bf16.mxu0 0
  %261 = vmatpush1.bf16.msra.mxu0 0
  %262 = vmatprep.subr.bf16.mxu0 0
  %263 = vmatpush1.bf16.msra.mxu0 0
  %264 = vmatprep.mubr.bf16.mxu0 0
  %265 = vmatmul.mubr.bf16.gmra.mrb[0].mxu0 %v180
  %v266 = vpop.f32.mrb[0].mxu0
  %v267 = vadd.f32 %v158, %v266
  %v268 = vpop.f32.mrb[0].mxu0
  %v269 = vpop.f32.mrb[0].mxu0
  %v270 = vadd.f32 %v161, %v269
  %v271 = vpop.f32.mrb[0].mxu0
  %272 = vmatprep.mubr.bf16.mxu0 0
  %273 = vmatmul.mubr.bf16.gmra.mrb[0].mxu0 %v181
  %v274 = vpop.f32.mrb[0].mxu0
  %v275 = vadd.f32 %v166, %v274
  %v276 = vpop.f32.mrb[0].mxu0
  %v277 = vpop.f32.mrb[0].mxu0
  %v278 = vadd.f32 %v169, %v277
  %v279 = vpop.f32.mrb[0].mxu0
  %280 = vdwg.mxu0
  %s281 = scalar_lea.vmem %s0, 32
  %v282 = vld [vmem:[%s281] sm:$0xf]
  %v283 = vld [vmem:[%s281 + $0x4] sm:$0xf]
  %v284 = vld [vmem:[%s281 + $0x8] sm:$0xf]
  %v285 = vld [vmem:[%s281 + $0xc] sm:$0xf]
  %s286 = scalar_lea.vmem %s1, 128
  %v287 = vld [vmem:[%s286] sm:$0xf]
  %v288 = vld [vmem:[%s286 + $0x4] sm:$0xf]
  %v289 = vld [vmem:[%s286 + $0x8] sm:$0xf]
  %v290 = vld [vmem:[%s286 + $0xc] sm:$0xf]
  %v291 = vld [vmem:[%s286 + $0x10] sm:$0xf]
  %v292 = vld [vmem:[%s286 + $0x14] sm:$0xf]
  %v293 = vld [vmem:[%s286 + $0x18] sm:$0xf]
  %v294 = vld [vmem:[%s286 + $0x1c] sm:$0xf]
  %v295 = vld [vmem:[%s286 + $0x20] sm:$0xf]
  %v296 = vld [vmem:[%s286 + $0x24] sm:$0xf]
  %v297 = vld [vmem:[%s286 + $0x28] sm:$0xf]
  %v298 = vld [vmem:[%s286 + $0x2c] sm:$0xf]
  %v299 = vld [vmem:[%s286 + $0x30] sm:$0xf]
  %v300 = vld [vmem:[%s286 + $0x34] sm:$0xf]
  %v301 = vld [vmem:[%s286 + $0x38] sm:$0xf]
  %v302 = vld [vmem:[%s286 + $0x3c] sm:$0xf]
  %v307 = vunpack.c.l.b16 %v282
  %v308 = vunpack.c.l.b16 %v283
  %v309 = vunpack.c.l.b16 %v284
  %v310 = vunpack.c.l.b16 %v285
  %v311 = vpack.c.b16 %v308, %v307
  %v312 = vpack.c.b16 %v310, %v309
  %v331 = vunpack.c.l.b16 %v287
  %v332 = vunpack.c.l.b16 %v288
  %v333 = vunpack.c.l.b16 %v289
  %v334 = vunpack.c.l.b16 %v290
  %v335 = vunpack.c.l.b16 %v291
  %v336 = vunpack.c.l.b16 %v292
  %v337 = vunpack.c.l.b16 %v293
  %v338 = vunpack.c.l.b16 %v294
  %v339 = vunpack.c.l.b16 %v295
  %v340 = vunpack.c.l.b16 %v296
  %v341 = vunpack.c.l.b16 %v297
  %v342 = vunpack.c.l.b16 %v298
  %v343 = vunpack.c.l.b16 %v299
  %v344 = vunpack.c.l.b16 %v300
  %v345 = vunpack.c.l.b16 %v301
  %v346 = vunpack.c.l.b16 %v302
  %v347 = vpack.c.b16 %v332, %v331
  %v348 = vpack.c.b16 %v334, %v333
  %v349 = vpack.c.b16 %v336, %v335
  %v350 = vpack.c.b16 %v338, %v337
  %v351 = vpack.c.b16 %v340, %v339
  %v352 = vpack.c.b16 %v342, %v341
  %v353 = vpack.c.b16 %v344, %v343
  %v354 = vpack.c.b16 %v346, %v345
  %363 = vmatprep.subr.bf16.mxu0 0
  %364 = vmatpush1.bf16.msra.mxu0 %v347
  %365 = vmatprep.subr.bf16.mxu0 0
  %366 = vmatpush1.bf16.msra.mxu0 %v348
  %367 = vmatprep.subr.bf16.mxu0 0
  %368 = vmatpush1.bf16.msra.mxu0 %v349
  %369 = vmatprep.subr.bf16.mxu0 0
  %370 = vmatpush1.bf16.msra.mxu0 %v350
  %371 = vmatprep.subr.bf16.mxu0 0
  %372 = vmatpush1.bf16.msra.mxu0 %v351
  %373 = vmatprep.subr.bf16.mxu0 0
  %374 = vmatpush1.bf16.msra.mxu0 %v352
  %375 = vmatprep.subr.bf16.mxu0 0
  %376 = vmatpush1.bf16.msra.mxu0 %v353
  %377 = vmatprep.subr.bf16.mxu0 0
  %378 = vmatpush1.bf16.msra.mxu0 %v354
  %379 = vmatprep.subr.bf16.mxu0 0
  %380 = vmatpush1.bf16.msra.mxu0 0
  %381 = vmatprep.subr.bf16.mxu0 0
  %382 = vmatpush1.bf16.msra.mxu0 0
  %383 = vmatprep.subr.bf16.mxu0 0
  %384 = vmatpush1.bf16.msra.mxu0 0
  %385 = vmatprep.subr.bf16.mxu0 0
  %386 = vmatpush1.bf16.msra.mxu0 0
  %387 = vmatprep.subr.bf16.mxu0 0
  %388 = vmatpush1.bf16.msra.mxu0 0
  %389 = vmatprep.subr.bf16.mxu0 0
  %390 = vmatpush1.bf16.msra.mxu0 0
  %391 = vmatprep.subr.bf16.mxu0 0
  %392 = vmatpush1.bf16.msra.mxu0 0
  %393 = vmatprep.subr.bf16.mxu0 0
  %394 = vmatpush1.bf16.msra.mxu0 0
  %395 = vmatprep.mubr.bf16.mxu0 0
  %396 = vmatmul.mubr.bf16.gmra.mrb[0].mxu0 %v311
  %v397 = vpop.f32.mrb[0].mxu0
  %v398 = vadd.f32 0.0, %v397
  %v399 = vpop.f32.mrb[0].mxu0
  %v400 = vpop.f32.mrb[0].mxu0
  %v401 = vadd.f32 0.0, %v400
  %v402 = vpop.f32.mrb[0].mxu0
  %403 = vmatprep.mubr.bf16.mxu0 0
  %404 = vmatmul.mubr.bf16.gmra.mrb[0].mxu0 %v312
  %v405 = vpop.f32.mrb[0].mxu0
  %v406 = vadd.f32 0.0, %v405
  %v407 = vpop.f32.mrb[0].mxu0
  %v408 = vpop.f32.mrb[0].mxu0
  %v409 = vadd.f32 0.0, %v408
  %v410 = vpop.f32.mrb[0].mxu0
  %411 = vdwg.mxu0
  %v412 = vadd.f32 %v267, %v398
  %v413 = vadd.f32 %v270, %v401
  %v414 = vadd.f32 %v275, %v406
  %v415 = vadd.f32 %v278, %v409
  %v416 = vld [vmem:[%s2] sm:$0x1]
  %v418 = vlaneseq
  %v419 = vshrl.u32 %v418, 7
  %v420 = vsub.s32 0, %v419
  %v421 = vrot.slane %v416, %v420
  %v423 = vadd.f32 %v412, %v421
  %v424 = vadd.f32 %v413, %v421
  %v425 = vadd.f32 %v414, %v421
  %v426 = vadd.f32 %v415, %v421
  %v427 = vmax.f32 %v423, 0.0
  %v428 = vmax.f32 %v424, 0.0
  %v429 = vmax.f32 %v425, 0.0
  %v430 = vmax.f32 %v426, 0.0
  %v431 = vadd.f32 %v427, %v428
  %v432 = vrot.slane %v431, 4
  %v433 = vadd.f32 %v431, %v432
  %v434 = vrot.slane %v433, 2
  %v435 = vadd.f32 %v433, %v434
  %v436 = vrot.slane %v435, 1
  %v437 = vadd.f32 %v435, %v436
  %v438 = vadd.f32 %v429, %v430
  %v439 = vrot.slane %v438, 4
  %v440 = vadd.f32 %v438, %v439
  %v441 = vrot.slane %v440, 2
  %v442 = vadd.f32 %v440, %v441
  %v443 = vrot.slane %v442, 1
  %v444 = vadd.f32 %v442, %v443
  %vm445 = vcmask 1040384
  %v446 = vsel %vm445, %v437, %v444
  %v447 = vld [vmem:[%s3] sm:$0xff]
  %v448 = vld [vmem:[%s3 + $0x8] sm:$0xff]
  %v449 = vld [vmem:[%s3 + $0x10] sm:$0xff]
  %v450 = vld [vmem:[%s3 + $0x18] sm:$0xff]
  %v451 = vld [vmem:[%s3 + $0x20] sm:$0xff]
  %v452 = vld [vmem:[%s3 + $0x28] sm:$0xff]
  %v453 = vld [vmem:[%s3 + $0x30] sm:$0xff]
  %v454 = vld [vmem:[%s3 + $0x38] sm:$0xff]
  %v455 = vld [vmem:[%s3 + $0x40] sm:$0xff]
  %v456 = vld [vmem:[%s3 + $0x48] sm:$0xff]
  %v457 = vld [vmem:[%s3 + $0x50] sm:$0xff]
  %v458 = vld [vmem:[%s3 + $0x58] sm:$0xff]
  %v459 = vld [vmem:[%s3 + $0x60] sm:$0xff]
  %v460 = vld [vmem:[%s3 + $0x68] sm:$0xff]
  %v461 = vld [vmem:[%s3 + $0x70] sm:$0xff]
  %v462 = vld [vmem:[%s3 + $0x78] sm:$0xff]
  %v463 = vld [vmem:[%s4] sm:$0x1]
  %v465 = vlaneseq
  %v466 = vshrl.u32 %v465, 7
  %v467 = vsub.s32 0, %v466
  %v468 = vrot.slane %v463, %v467
  %470 = vmatprep.subr.mxu0 0.0
  %471 = vmatpush1.msra.mxu0 %v447
  %472 = vmatprep.subr.mxu0 0.0
  %473 = vmatpush1.msra.mxu0 %v448
  %474 = vmatprep.subr.mxu0 0.0
  %475 = vmatpush1.msra.mxu0 %v449
  %476 = vmatprep.subr.mxu0 0.0
  %477 = vmatpush1.msra.mxu0 %v450
  %478 = vmatprep.subr.mxu0 0.0
  %479 = vmatpush1.msra.mxu0 %v451
  %480 = vmatprep.subr.mxu0 0.0
  %481 = vmatpush1.msra.mxu0 %v452
  %482 = vmatprep.subr.mxu0 0.0
  %483 = vmatpush1.msra.mxu0 %v453
  %484 = vmatprep.subr.mxu0 0.0
  %485 = vmatpush1.msra.mxu0 %v454
  %486 = vmatprep.subr.mxu0 0.0
  %487 = vmatpush1.msra.mxu0 %v455
  %488 = vmatprep.subr.mxu0 0.0
  %489 = vmatpush1.msra.mxu0 %v456
  %490 = vmatprep.subr.mxu0 0.0
  %491 = vmatpush1.msra.mxu0 %v457
  %492 = vmatprep.subr.mxu0 0.0
  %493 = vmatpush1.msra.mxu0 %v458
  %494 = vmatprep.subr.mxu0 0.0
  %495 = vmatpush1.msra.mxu0 %v459
  %496 = vmatprep.subr.mxu0 0.0
  %497 = vmatpush1.msra.mxu0 %v460
  %498 = vmatprep.subr.mxu0 0.0
  %499 = vmatpush1.msra.mxu0 %v461
  %500 = vmatprep.subr.mxu0 0.0
  %501 = vmatpush1.msra.mxu0 %v462
  %502 = vmatprep.subr.mxu0 0.0
  %503 = vmatpush1.msra.mxu0 0.0
  %504 = vmatprep.subr.mxu0 0.0
  %505 = vmatpush1.msra.mxu0 0.0
  %506 = vmatprep.subr.mxu0 0.0
  %507 = vmatpush1.msra.mxu0 0.0
  %508 = vmatprep.subr.mxu0 0.0
  %509 = vmatpush1.msra.mxu0 0.0
  %510 = vmatprep.subr.mxu0 0.0
  %511 = vmatpush1.msra.mxu0 0.0
  %512 = vmatprep.subr.mxu0 0.0
  %513 = vmatpush1.msra.mxu0 0.0
  %514 = vmatprep.subr.mxu0 0.0
  %515 = vmatpush1.msra.mxu0 0.0
  %516 = vmatprep.subr.mxu0 0.0
  %517 = vmatpush1.msra.mxu0 0.0
  %518 = vmatprep.subr.mxu0 0.0
  %519 = vmatpush1.msra.mxu0 0.0
  %520 = vmatprep.subr.mxu0 0.0
  %521 = vmatpush1.msra.mxu0 0.0
  %522 = vmatprep.subr.mxu0 0.0
  %523 = vmatpush1.msra.mxu0 0.0
  %524 = vmatprep.subr.mxu0 0.0
  %525 = vmatpush1.msra.mxu0 0.0
  %526 = vmatprep.subr.mxu0 0.0
  %527 = vmatpush1.msra.mxu0 0.0
  %528 = vmatprep.subr.mxu0 0.0
  %529 = vmatpush1.msra.mxu0 0.0
  %530 = vmatprep.subr.mxu0 0.0
  %531 = vmatpush1.msra.mxu0 0.0
  %532 = vmatprep.subr.mxu0 0.0
  %533 = vmatpush1.msra.mxu0 0.0
  %534 = vmatprep.mubr.f32.mxu0 0.0
  %535 = vmatmul.mubr.f32.gmra.mrb[0].mxu0 %v446
  %v536 = vpop.f32.mrb[0].mxu0
  %v537 = vadd.f32 %v468, %v536
  %v538 = vpop.f32.mrb[0].mxu0
  %539 = vdwg.mxu0
  %540 = vst [vmem:[%s5] sm:$0x3] %v537
  // Predicated region
  $region22: #{searchspace_forward.1} parent=0 // pred_check
    _
  $region23: #{searchspace_forward.1} parent=0 // pred_check_branch
    %542 = sbr.rel (0) target = $region25
  $region24: #{searchspace_forward.1} parent=0 // pred_region
    _
  $region25: #{searchspace_forward.1} parent=0 // pred_fallthru
    _
  // Predicated region
  $region26: #{searchspace_forward.1} parent=0 // pred_check
    _
  $region27: #{searchspace_forward.1} parent=0 // pred_check_branch
    %544 = sbr.rel (0) target = $region29
  $region28: #{searchspace_forward.1} parent=0 // pred_region
    _
  $region29: #{searchspace_forward.1} parent=0 // pred_fallthru
    _

</llo_original>
